<compile_context>
chip_gen: v5e
topology: v5e:2x2
jax: 0.10.0
libtpu: 0.0.40
codegen_flags: <defaults>
</compile_context>

<pallas_src>
import functools

import jax
import jax.numpy as jnp
from jax.experimental import pallas as pl
from jax.experimental.pallas import tpu as pltpu

ALPHA = 0.25
GAMMA = 2.0  # statically 2 -> implemented as an explicit square


def _default_num_splits():
    """1 on single-TensorCore chips (v5e/v6e), 2 on dual-TC chips (v4/v5p/v7x)."""
    try:
        kind = jax.devices()[0].device_kind.lower()
    except Exception:
        return 1
    single_tc = ("v5e", "v5 lite", "lite", "v6e", "v6 lite", "trillium")
    if any(tag in kind for tag in single_tc):
        return 1
    return 2


def _focal_loss_kernel(logits_ref, targets_ref, out_ref, acc_ref, *,
                       n_rows, tiles_per_split):
    s = pl.program_id(0)  # core-split axis ("parallel")
    j = pl.program_id(1)  # row-tile axis ("arbitrary", carries the accumulator)

    @pl.when(j == 0)
    def _():
        acc_ref[...] = jnp.zeros_like(acc_ref)

    logits = logits_ref[...].astype(jnp.float32)  # (TN, C) cast per tile (VPU, cheap)
    tgt = targets_ref[...]                        # (TN, 1) int32
    tn, c = logits.shape

    # Numerically stable log-softmax pieces.
    m = jnp.max(logits, axis=-1, keepdims=True)        # (TN, 1)  XLU
    e = jnp.exp(logits - m)                            # (TN, C)  EUP (the only big exp)
    sum_e = jnp.sum(e, axis=-1, keepdims=True)         # (TN, 1)  XLU

    # Gather the target logit via an iota mask (no dynamic gather on TPU).
    class_ids = jax.lax.broadcasted_iota(jnp.int32, (tn, c), 1)
    target_logit = jnp.sum(jnp.where(class_ids == tgt, logits, 0.0),
                           axis=-1, keepdims=True)     # (TN, 1)

    lse = m + jnp.log(sum_e)
    ce = jnp.maximum(lse - target_logit, 0.0)          # clamp against -eps rounding
    pt = jnp.exp(-ce)                                  # per-row exp on (TN, 1): cheap
    one_minus_pt = 1.0 - pt
    focal = ALPHA * (one_minus_pt * one_minus_pt) * ce  # gamma==2 -> one VPU multiply

    # Mask rows beyond the true N (partial edge blocks / dead grid slots).  Garbage
    # rows may produce NaN/Inf above; jnp.where still selects 0.0 for them, so no
    # NaN reaches the accumulator.
    row_base = (s * tiles_per_split + j) * tn
    row_ids = row_base + jax.lax.broadcasted_iota(jnp.int32, (tn, 1), 0)
    focal = jnp.where(row_ids < n_rows, focal, 0.0)

    # Steady-state step: plain elementwise VPU add into the per-row accumulator.
    acc_ref[...] += focal

    # Epilogue: single cross-lane reduce + lane-dense (8, 128) output write.
    @pl.when(j == pl.num_programs(1) - 1)
    def _():
        out_ref[...] = jnp.zeros_like(out_ref) + jnp.sum(acc_ref[...])


def focal_loss(outputs, targets, reduce="mean", *, num_splits=None,
               tile_bytes=4 * 1024 * 1024):
    """outputs: (N, C) logits (any float dtype); targets: (N,) int class indices."""
    n, c = outputs.shape
    itemsize = jnp.dtype(outputs.dtype).itemsize
    if num_splits is None:
        num_splits = _default_num_splits()

    # Row tile sized from the real (lane-padded) VMEM row width.
    cp = max(128, -(-c // 128) * 128)                       # lane-padded class width
    tn = (tile_bytes // (cp * itemsize)) // 8 * 8           # rows per ~tile_bytes block
    # Keep the whole working set (2x logits blocks, 2x targets blocks, acc scratch)
    # within a conservative ~28 MiB so it fits every generation's scoped VMEM.
    bytes_per_row = 2 * cp * itemsize + 2 * 128 * 4 + 128 * 4
    tn_budget = ((28 * 1024 * 1024) // bytes_per_row) // 8 * 8
    tn = max(8, min(tn, tn_budget))

    if tn >= n:
        tn = n                      # single full-extent block (no (8,) divisibility needed)
        total_tiles = 1
    else:
        total_tiles = -(-n // tn)

    tiles_per_split = -(-total_tiles // num_splits)
    last_tile = total_tiles - 1

    targets2d = targets.astype(jnp.int32).reshape(n, 1)

    vmem_est = (2 * tn * cp * itemsize      # double-buffered logits blocks
                + 2 * tn * 128 * 4          # double-buffered targets blocks (lane-padded)
                + tn * 128 * 4              # (tn, 1) f32 accumulator scratch
                + 2 * 8 * 128 * 4)          # output blocks
    vmem_limit = int(min(64 * 1024 * 1024, max(32 * 1024 * 1024, vmem_est * 5 // 4)))

    kernel = functools.partial(
        _focal_loss_kernel, n_rows=n, tiles_per_split=tiles_per_split
    )

    def row_map(s, j):
        # Clamp dead slots (uneven split) onto the last real tile; the in-kernel
        # row mask (computed from the *unclamped* slot index) zeroes their output.
        return (jnp.minimum(s * tiles_per_split + j, last_tile), 0)

    partials = pl.pallas_call(
        kernel,
        out_shape=jax.ShapeDtypeStruct((num_splits * 8, 128), jnp.float32),
        grid_spec=pltpu.PrefetchScalarGridSpec(
            num_scalar_prefetch=0,
            grid=(num_splits, tiles_per_split),
            in_specs=[
                pl.BlockSpec((tn, c), row_map),
                pl.BlockSpec((tn, 1), row_map),
            ],
            out_specs=pl.BlockSpec((8, 128), lambda s, j: (s, 0)),
            scratch_shapes=[pltpu.VMEM((tn, 1), jnp.float32)],
        ),
        compiler_params=pltpu.CompilerParams(
            dimension_semantics=("parallel", "arbitrary"),
            vmem_limit_bytes=vmem_limit,
        ),
    )(outputs, targets2d)

    total = jnp.sum(partials.reshape(num_splits, 8, 128)[:, 0, 0])

    if reduce == "mean":
        return total / jnp.float32(n)
    elif reduce == "sum":
        return total
    else:
        # TODO(synk): reduce='none' (per-sample vector output) is not implemented in-kernel.
        raise NotImplementedError("only 'mean' and 'sum' reductions are implemented")


def _reference(outputs, targets, reduce="mean"):
    logits = outputs.astype(jnp.float32)
    logp = jax.nn.log_softmax(logits, axis=-1)
    ce = -jnp.take_along_axis(logp, targets[:, None].astype(jnp.int32), axis=-1)[:, 0]
    pt = jnp.exp(-ce)
    focal = ALPHA * (1.0 - pt) ** GAMMA * ce
    return jnp.mean(focal) if reduce == "mean" else jnp.sum(focal)


if __name__ == "__main__":
    key = jax.random.PRNGKey(0)
    k1, k2, k3, k4 = jax.random.split(key, 4)

    # Small case: single full-extent block, N not a multiple of 8.
    N1, C1 = 12, 16
    out1 = jax.random.normal(k1, (N1, C1), dtype=jnp.float32)
    tgt1 = jax.random.randint(k2, (N1,), 0, C1, dtype=jnp.int32)

    # Larger case forcing multiple row tiles, a partial edge tile, a dead grid slot
    # (num_splits=2 with an odd tile count) and the accumulator epilogue path.
    N2, C2 = 300, 16
    out2 = jax.random.normal(k3, (N2, C2), dtype=jnp.float32)
    tgt2 = jax.random.randint(k4, (N2,), 0, C2, dtype=jnp.int32)

    cases = [
        (out1, tgt1, {}),
        (out2, tgt2, dict(num_splits=2, tile_bytes=64 * 1024)),
    ]
    for o, t, kwargs in cases:
        for red in ("mean", "sum"):
            got = jax.block_until_ready(focal_loss(o, t, reduce=red, **kwargs))
            ref = jax.block_until_ready(_reference(o, t, red))
            assert jnp.allclose(got, ref, rtol=1e-5, atol=1e-6), (red, got, ref)

    print("KERNEL_OK")
</pallas_src>

<mosaic_0001>
module attributes {stable_mosaic.version = 11 : i64} {
  func.func @_focal_loss_kernel(%arg0: i32, %arg1: i32, %arg2: memref<12x16xf32, #tpu.memory_space<vmem>>, %arg3: memref<12x1xi32, #tpu.memory_space<vmem>>, %arg4: memref<8x128xf32, #tpu.memory_space<vmem>>, %arg5: memref<12x1xf32, #tpu.memory_space<vmem>>) attributes {dimension_semantics = [#tpu.dimension_semantics<parallel>, #tpu.dimension_semantics<arbitrary>], iteration_bounds = array<i64: 2, 1>, scalar_prefetch = 0 : i64, scratch_operands = 1 : i64, tpu.core_type = #tpu.core_type<tc>, window_params = [{transform_indices = @transform_0, window_bounds = array<i64: 12, 16>}, {transform_indices = @transform_1, window_bounds = array<i64: 12, 1>}, {transform_indices = @transform_2, window_bounds = array<i64: 8, 128>}]} {
    %c0_i32 = arith.constant 0 : i32
    %0 = arith.cmpi eq, %arg1, %c0_i32 : i32
    %1 = arith.extui %0 : i1 to i32
    %c0_i32_0 = arith.constant 0 : i32
    %2 = arith.cmpi ne, %1, %c0_i32_0 : i32
    scf.if %2 {
      %cst_19 = arith.constant 0.000000e+00 : f32
      %49 = vector.broadcast %cst_19 : f32 to vector<12x1xf32>
      %c0_20 = arith.constant 0 : index
      %c0_21 = arith.constant 0 : index
      %50 = vector.load %arg5[%c0_20, %c0_21] : memref<12x1xf32, #tpu.memory_space<vmem>>, vector<12x1xf32>
      tpu.vector_store %arg5[%c0_20, %c0_21], %49 {strides = array<i32>} : memref<12x1xf32, #tpu.memory_space<vmem>>, vector<12x1xf32>,
    } else {
    }
    %c0 = arith.constant 0 : index
    %c0_1 = arith.constant 0 : index
    %3 = vector.load %arg2[%c0, %c0_1] : memref<12x16xf32, #tpu.memory_space<vmem>>, vector<12x16xf32>
    %c0_2 = arith.constant 0 : index
    %c0_3 = arith.constant 0 : index
    %4 = vector.load %arg3[%c0_2, %c0_3] : memref<12x1xi32, #tpu.memory_space<vmem>>, vector<12x1xi32>
    %cst = arith.constant dense<0xFF800000> : vector<12xf32>
    %5 = vector.multi_reduction <maximumf>, %3, %cst [1] : vector<12x16xf32> to vector<12xf32>
    %6 = vector.shape_cast %5 : vector<12xf32> to vector<12x1xf32>
    %7 = vector.broadcast %6 : vector<12x1xf32> to vector<12x16xf32>
    %8 = arith.subf %3, %7 : vector<12x16xf32>
    %9 = math.exp %8 : vector<12x16xf32>
    %cst_4 = arith.constant dense<0.000000e+00> : vector<12xf32>
    %10 = vector.multi_reduction <add>, %9, %cst_4 [1] : vector<12x16xf32> to vector<12xf32>
    %11 = vector.shape_cast %10 : vector<12xf32> to vector<12x1xf32>
    %12 = tpu.iota {dimensions = array<i32: 1>} : vector<12x16xi32>
    %13 = vector.broadcast %4 : vector<12x1xi32> to vector<12x16xi32>
    %14 = arith.cmpi eq, %12, %13 : vector<12x16xi32>
    %cst_5 = arith.constant 0.000000e+00 : f32
    %15 = vector.broadcast %cst_5 : f32 to vector<12x16xf32>
    %16 = arith.select %14, %3, %15 : vector<12x16xi1>, vector<12x16xf32>
    %cst_6 = arith.constant dense<0.000000e+00> : vector<12xf32>
    %17 = vector.multi_reduction <add>, %16, %cst_6 [1] : vector<12x16xf32> to vector<12xf32>
    %18 = vector.shape_cast %17 : vector<12xf32> to vector<12x1xf32>
    %19 = math.log %11 : vector<12x1xf32>
    %20 = arith.addf %6, %19 : vector<12x1xf32>
    %21 = arith.subf %20, %18 : vector<12x1xf32>
    %cst_7 = arith.constant 0.000000e+00 : f32
    %22 = vector.broadcast %cst_7 : f32 to vector<12x1xf32>
    %23 = arith.maximumf %21, %22 : vector<12x1xf32>
    %cst_8 = arith.constant 0.000000e+00 : f32
    %24 = vector.broadcast %cst_8 : f32 to vector<12x1xf32>
    %25 = arith.subf %24, %23 : vector<12x1xf32>
    %26 = math.exp %25 : vector<12x1xf32>
    %cst_9 = arith.constant 1.000000e+00 : f32
    %27 = vector.broadcast %cst_9 : f32 to vector<12x1xf32>
    %28 = arith.subf %27, %26 : vector<12x1xf32>
    %29 = arith.mulf %28, %28 : vector<12x1xf32>
    %cst_10 = arith.constant 2.500000e-01 : f32
    %30 = vector.broadcast %cst_10 : f32 to vector<12x1xf32>
    %31 = arith.mulf %30, %29 : vector<12x1xf32>
    %32 = arith.mulf %31, %23 : vector<12x1xf32>
    %c1_i32 = arith.constant 1 : i32
    %33 = arith.muli %arg0, %c1_i32 : i32
    %34 = arith.addi %33, %arg1 : i32
    %c12_i32 = arith.constant 12 : i32
    %35 = arith.muli %34, %c12_i32 : i32
    %36 = tpu.iota {dimensions = array<i32: 0>} : vector<12x1xi32>
    %37 = vector.broadcast %35 : i32 to vector<12x1xi32>
    %38 = arith.addi %37, %36 : vector<12x1xi32>
    %c12_i32_11 = arith.constant 12 : i32
    %39 = vector.broadcast %c12_i32_11 : i32 to vector<12x1xi32>
    %40 = arith.cmpi slt, %38, %39 : vector<12x1xi32>
    %cst_12 = arith.constant 0.000000e+00 : f32
    %41 = vector.broadcast %cst_12 : f32 to vector<12x1xf32>
    %42 = arith.select %40, %32, %41 : vector<12x1xi1>, vector<12x1xf32>
    %c0_13 = arith.constant 0 : index
    %c0_14 = arith.constant 0 : index
    %43 = vector.load %arg5[%c0_13, %c0_14] : memref<12x1xf32, #tpu.memory_space<vmem>>, vector<12x1xf32>
    %44 = arith.addf %43, %42 : vector<12x1xf32>
    %c0_15 = arith.constant 0 : index
    %c0_16 = arith.constant 0 : index
    %45 = vector.load %arg5[%c0_15, %c0_16] : memref<12x1xf32, #tpu.memory_space<vmem>>, vector<12x1xf32>
    tpu.vector_store %arg5[%c0_15, %c0_16], %44 {strides = array<i32>} : memref<12x1xf32, #tpu.memory_space<vmem>>, vector<12x1xf32>,
    %c0_i32_17 = arith.constant 0 : i32
    %46 = arith.cmpi eq, %arg1, %c0_i32_17 : i32
    %47 = arith.extui %46 : i1 to i32
    %c0_i32_18 = arith.constant 0 : i32
    %48 = arith.cmpi ne, %47, %c0_i32_18 : i32
    scf.if %48 {
      %cst_19 = arith.constant 0.000000e+00 : f32
      %49 = vector.broadcast %cst_19 : f32 to vector<8x128xf32>
      %c0_20 = arith.constant 0 : index
      %c0_21 = arith.constant 0 : index
      %50 = vector.load %arg5[%c0_20, %c0_21] : memref<12x1xf32, #tpu.memory_space<vmem>>, vector<12x1xf32>
      %51 = vector.shape_cast %50 : vector<12x1xf32> to vector<1x12x1xf32>
      %cst_22 = arith.constant dense<0.000000e+00> : vector<1xf32>
      %52 = vector.multi_reduction <add>, %51, %cst_22 [1, 2] : vector<1x12x1xf32> to vector<1xf32>
      %53 = vector.shape_cast %52 : vector<1xf32> to vector<1x1x1xf32>
      %54 = vector.extract %53[0, 0, 0] : f32 from vector<1x1x1xf32>
      %55 = vector.broadcast %54 : f32 to vector<8x128xf32>
      %56 = arith.addf %49, %55 : vector<8x128xf32>
      %c0_23 = arith.constant 0 : index
      %c0_24 = arith.constant 0 : index
      %57 = vector.load %arg4[%c0_23, %c0_24] : memref<8x128xf32, #tpu.memory_space<vmem>>, vector<8x128xf32>
      tpu.vector_store %arg4[%c0_23, %c0_24], %56 {strides = array<i32>} : memref<8x128xf32, #tpu.memory_space<vmem>>, vector<8x128xf32>,
    } else {
    }
    return
  }
  func.func @transform_0(%arg0: i32, %arg1: i32) -> (i32, i32) {
    %c1_i32 = arith.constant 1 : i32
    %0 = arith.muli %arg0, %c1_i32 : i32
    %1 = arith.addi %0, %arg1 : i32
    %c0_i32 = arith.constant 0 : i32
    %2 = arith.minsi %1, %c0_i32 : i32
    %c0_i32_0 = arith.constant 0 : i32
    %c0_i32_1 = arith.constant 0 : i32
    return %2, %c0_i32_0 : i32, i32
  }
  func.func @transform_1(%arg0: i32, %arg1: i32) -> (i32, i32) {
    %c1_i32 = arith.constant 1 : i32
    %0 = arith.muli %arg0, %c1_i32 : i32
    %1 = arith.addi %0, %arg1 : i32
    %c0_i32 = arith.constant 0 : i32
    %2 = arith.minsi %1, %c0_i32 : i32
    %c0_i32_0 = arith.constant 0 : i32
    %c0_i32_1 = arith.constant 0 : i32
    return %2, %c0_i32_0 : i32, i32
  }
  func.func @transform_2(%arg0: i32, %arg1: i32) -> (i32, i32) {
    %c0_i32 = arith.constant 0 : i32
    %c0_i32_0 = arith.constant 0 : i32
    return %arg0, %c0_i32 : i32, i32
  }
}

</mosaic_0001>

<llo_original>
// kernel: tpu_custom_call.1
$region0: #{tpu_custom_call.1}
  #allocation0 [shape = 'u32[]', space=smem, size = 0x4, offset = 0x4, fixed_abs, tag = 'smem constant byte address 0x4 - core index']
  #allocation1 [shape = 'u32[72,128]{1,0:T(1,128)}', space=vmem, size = 0x9000, scoped, tag = 'internal scratch']
  #allocation2 [shape = 'f32[12,1]{1,0:T(8,128)}', space=vmem, size = 0x2000, scoped, tag = 'scratch operand']
  %s0 = inlined_call_operand.vmem [shape: f32[12,16], index: 0, kind: input, shape index: {}]
  %s1 = inlined_call_operand.vmem [shape: s32[12,1], index: 1, kind: input, shape index: {}]
  %s2 = inlined_call_operand.hbm [shape: f32[16,128], index: 2, kind: output, shape index: {}]
  %s3 = sld [smem:[#allocation0]]
  $region49: #{tpu_custom_call.1} parent=0
    _
  %s5 = ssub.s32 1, %s3
  %s6 = scalar_select 0, %s5, %s3
  $region1: #{tpu_custom_call.1} parent=0
    #allocation3 [shape = 'u8[8192]{0}', space=vmem, size = 0x2000, scoped, tag = 'output window, operand 0']
    #allocation4 [shape = 's32[2]{0}', space=sflag, size = 0x8, scoped, tag = 'scoped memory for tpu_custom_call.1']
    %7 = vsyncpa [#allocation4], 0
    %s8 = scalar_lea.sflag [#allocation4], 1
    %9 = vsyncpa %s8, 0
    loop: start=0, step=1, limit=4
    $region2: #{tpu_custom_call.1} parent=1 // loop_pre_header
      _
    $region3: #{tpu_custom_call.1} parent=1 // loop_header
      %s11 = sphi 0, %s15
      %p12 = scmp.ge.s32.totalorder %s11, 4
      %s18 = sphi 0, %s30
      %s19 = sphi 0, %s26
      %s20 = sphi 0, %s18
      %s21 = sphi 0, %s19
      %s22 = sphi 0, %s20
      %s23 = sphi 0, %s21
      %s39 = sphi 0, %s41
      %s42 = sphi 0, %s39
      %s43 = sphi 0, %s42
      %s59 = sphi 0, %s43
      %s71 = sphi 0, %s73
      %s74 = sphi 0, %s71
      %s75 = sphi 0, %s74
      %s91 = sphi 0, %s75
      %s97 = sphi 0, %s99
      %s100 = sphi 0, %s97
      %s101 = sphi 0, %s100
      %s117 = sphi 0, %s101
    $region4: #{tpu_custom_call.1} parent=1 // loop_header_branch
      %14 = sbr.rel (%p12) target = $region8
    $region5: #{tpu_custom_call.1} parent=1 // loop_body
      %s16 = ssub.s32 %s11, 1
      %s17 = ssub.s32 %s11, 2
      %s24 = sadd.s32 1, %s19
      %p25 = scmp.ge.s32.totalorder %s24, 1
      %s26 = scalar_select %p25, 0, %s24
      %s27 = sadd.s32 1, %s18
      %s28 = scalar_select %p25, %s27, %s18
      %p29 = scmp.ge.s32.totalorder %s28, 2
      %s30 = scalar_select %p29, 0, %s28
      %s31 = sadd.s32 %s18, %s19
      %p32 = scmp.lt.s32.totalorder %s31, 0
      %s33 = scalar_select %p32, %s31, 0
      %s34 = sadd.s32 %s30, %s26
      %p35 = scmp.lt.s32.totalorder %s34, 0
      %s36 = scalar_select %p35, %s34, 0
      %s37 = ssub.s32 %s33, %s36
      %p38 = scmp.eq.s32.totalorder %s37, 0
      %s40 = sadd.s32 %s39, 1
      %s41 = scalar_select %p38, %s39, %s40
      %p44 = pneg %p38
      %p45 = scmp.eq.s32.totalorder %s11, 1
      %p46 = por %p44, %p45
      %p47 = scmp.ne.s32.totalorder %s39, %s42
      %p48 = scmp.eq.s32.totalorder %s11, 0
      %p49 = por %p47, %p48
      %p50 = scmp.ne.s32.totalorder %s39, %s42
      %p51 = scmp.eq.s32.totalorder %s16, 1
      %p52 = por %p50, %p51
      %p53 = scmp.ne.s32.totalorder %s42, %s43
      %p54 = scmp.eq.s32.totalorder %s16, 0
      %p55 = por %p53, %p54
      %p56 = scmp.ne.s32.totalorder %s42, %s43
      %p57 = scmp.eq.s32.totalorder %s17, 1
      %p58 = por %p56, %p57
      %p60 = scmp.ne.s32.totalorder %s43, %s59
      %p61 = scmp.eq.s32.totalorder %s17, 0
      %p62 = por %p60, %p61
      %s63 = sadd.s32 %s18, %s19
      %p64 = scmp.lt.s32.totalorder %s63, 0
      %s65 = scalar_select %p64, %s63, 0
      %s66 = sadd.s32 %s30, %s26
      %p67 = scmp.lt.s32.totalorder %s66, 0
      %s68 = scalar_select %p67, %s66, 0
      %s69 = ssub.s32 %s65, %s68
      %p70 = scmp.eq.s32.totalorder %s69, 0
      %s72 = sadd.s32 %s71, 1
      %s73 = scalar_select %p70, %s71, %s72
      %p76 = pneg %p70
      %p77 = scmp.eq.s32.totalorder %s11, 1
      %p78 = por %p76, %p77
      %p79 = scmp.ne.s32.totalorder %s71, %s74
      %p80 = scmp.eq.s32.totalorder %s11, 0
      %p81 = por %p79, %p80
      %p82 = scmp.ne.s32.totalorder %s71, %s74
      %p83 = scmp.eq.s32.totalorder %s16, 1
      %p84 = por %p82, %p83
      %p85 = scmp.ne.s32.totalorder %s74, %s75
      %p86 = scmp.eq.s32.totalorder %s16, 0
      %p87 = por %p85, %p86
      %p88 = scmp.ne.s32.totalorder %s74, %s75
      %p89 = scmp.eq.s32.totalorder %s17, 1
      %p90 = por %p88, %p89
      %p92 = scmp.ne.s32.totalorder %s75, %s91
      %p93 = scmp.eq.s32.totalorder %s17, 0
      %p94 = por %p92, %p93
      %s95 = ssub.s32 %s18, %s30
      %p96 = scmp.eq.s32.totalorder %s95, 0
      %s98 = sadd.s32 %s97, 1
      %s99 = scalar_select %p96, %s97, %s98
      %p102 = pneg %p96
      %p103 = scmp.eq.s32.totalorder %s11, 1
      %p104 = por %p102, %p103
      %p105 = scmp.ne.s32.totalorder %s97, %s100
      %p106 = scmp.eq.s32.totalorder %s11, 0
      %p107 = por %p105, %p106
      %p108 = scmp.ne.s32.totalorder %s97, %s100
      %p109 = scmp.eq.s32.totalorder %s16, 1
      %p110 = por %p108, %p109
      %p111 = scmp.ne.s32.totalorder %s100, %s101
      %p112 = scmp.eq.s32.totalorder %s16, 0
      %p113 = por %p111, %p112
      %p114 = scmp.ne.s32.totalorder %s100, %s101
      %p115 = scmp.eq.s32.totalorder %s17, 1
      %p116 = por %p114, %p115
      %p118 = scmp.ne.s32.totalorder %s101, %s117
      %p119 = scmp.eq.s32.totalorder %s17, 0
      %p120 = por %p118, %p119
      %p121 = scmp.le.s32.totalorder 1, %s11
      %p122 = scmp.lt.s32.totalorder %s11, 3
      %p123 = pnand %p121, %p122
      %p124 = pneg %p123
      // Predicated region
      $region9: #{tpu_custom_call.1} parent=5 // pred_check
        _
      $region10: #{tpu_custom_call.1} parent=5 // pred_check_branch
        %126 = sbr.rel (%p123) target = $region12
      $region11: #{tpu_custom_call.1} parent=5 // pred_region
        %s127 = ssub.s32 %s11, 1
      $region12: #{tpu_custom_call.1} parent=5 // pred_fallthru
        _
      %p128 = scmp.lt.s32.totalorder %s11, 2
      // Predicated region
      $region13: #{tpu_custom_call.1} parent=5 // pred_check
        %p129 = pneg %p128
      $region14: #{tpu_custom_call.1} parent=5 // pred_check_branch
        %131 = sbr.rel (%p129) target = $region16
      $region15: #{tpu_custom_call.1} parent=5 // pred_region
        // Predicated region
        $region17: #{tpu_custom_call.1} parent=15 // pred_check
          %p132 = pneg %p49
        $region18: #{tpu_custom_call.1} parent=15 // pred_check_branch
          %134 = sbr.rel (%p132) target = $region20
        $region19: #{tpu_custom_call.1} parent=15 // pred_region
          %s135 = sadd.s32 %s18, %s19
          %p136 = scmp.lt.s32.totalorder %s135, 0
          %s137 = scalar_select %p136, %s135, 0
          %s138 = smul.u32 2, %s137
          %p139 = scmp.lt.s32.totalorder %s138, 1
          %s140 = scalar_select %p139, %s138, 1
          %s141 = smul.addr %s140, 8
          %s142 = scalar_lea.vmem %s0, %s141
          %s143 = sadd.s32 %s18, %s19
          %p144 = scmp.lt.s32.totalorder %s143, 0
          %s145 = scalar_select %p144, %s143, 0
          %s146 = smul.u32 2, %s145
        $region20: #{tpu_custom_call.1} parent=15 // pred_fallthru
          _
        // Predicated region
        $region21: #{tpu_custom_call.1} parent=15 // pred_check
          %p147 = pneg %p81
        $region22: #{tpu_custom_call.1} parent=15 // pred_check_branch
          %149 = sbr.rel (%p147) target = $region24
        $region23: #{tpu_custom_call.1} parent=15 // pred_region
          %s150 = sadd.s32 %s18, %s19
          %p151 = scmp.lt.s32.totalorder %s150, 0
          %s152 = scalar_select %p151, %s150, 0
          %s153 = smul.u32 2, %s152
          %p154 = scmp.lt.s32.totalorder %s153, 1
          %s155 = scalar_select %p154, %s153, 1
          %s156 = smul.addr %s155, 8
          %s157 = scalar_lea.vmem %s1, %s156
          %s158 = sadd.s32 %s18, %s19
          %p159 = scmp.lt.s32.totalorder %s158, 0
          %s160 = scalar_select %p159, %s158, 0
          %s161 = smul.u32 2, %s160
        $region24: #{tpu_custom_call.1} parent=15 // pred_fallthru
          _
      $region16: #{tpu_custom_call.1} parent=5 // pred_fallthru
        _
      %p162 = scmp.le.s32.totalorder 1, %s11
      %p163 = scmp.lt.s32.totalorder %s11, 3
      %p164 = pnand %p162, %p163
      %p165 = pneg %p164
      // Predicated region
      $region25: #{tpu_custom_call.1} parent=5 // pred_check
        _
      $region26: #{tpu_custom_call.1} parent=5 // pred_check_branch
        %167 = sbr.rel (%p164) target = $region28
      $region27: #{tpu_custom_call.1} parent=5 // pred_region
        %s168 = ssub.s32 %s11, 1
        %s169 = sadd.s32 %s20, %s21
        %p170 = scmp.lt.s32.totalorder %s169, 0
        %s171 = scalar_select %p170, %s169, 0
        %s172 = smul.u32 2, %s171
        %p173 = scmp.lt.s32.totalorder %s172, 1
        %s174 = scalar_select %p173, %s172, 1
        %s175 = smul.addr %s174, 8
        %s176 = scalar_lea.vmem %s0, %s175
        %p177 = pneg %p55
        %p178 = pneg %p52
        %s179 = sadd.s32 %s20, %s21
        %p180 = scmp.lt.s32.totalorder %s179, 0
        %s181 = scalar_select %p180, %s179, 0
        %s182 = smul.u32 2, %s181
        %p183 = scmp.lt.s32.totalorder %s182, 1
        %s184 = scalar_select %p183, %s182, 1
        %s185 = smul.addr %s184, 8
        %s186 = scalar_lea.vmem %s1, %s185
        %p187 = pneg %p87
        %p188 = pneg %p84
        %p189 = pneg %p113
        %p190 = pneg %p110
        %s191 = sand.u32 %s100, 1
        %s192 = scalar_lea.sflag [#allocation4], %s191
        %s193 = sand.u32 %s100, 1
        %s194 = smul.addr %s193, 8
        %s195 = scalar_lea.vmem [#allocation3], %s194
        %s196 = sadd.s32 %s20, %s21
        %p197 = scmp.lt.s32.totalorder %s196, 0
        %s198 = scalar_select %p197, %s196, 0
        %s199 = smul.u32 2, %s198
        %p200 = scmp.lt.s32.totalorder %s199, 1
        %s201 = scalar_select %p200, %s199, 1
        %s202 = smul.addr %s201, 8
        %s203 = scalar_lea.vmem %s0, %s202
        %s204 = sadd.s32 %s20, %s21
        %p205 = scmp.lt.s32.totalorder %s204, 0
        %s206 = scalar_select %p205, %s204, 0
        %s207 = smul.u32 2, %s206
        %s208 = sadd.s32 %s20, %s21
        %p209 = scmp.lt.s32.totalorder %s208, 0
        %s210 = scalar_select %p209, %s208, 0
        %s211 = smul.u32 2, %s210
        %p212 = scmp.lt.s32.totalorder %s211, 1
        %s213 = scalar_select %p212, %s211, 1
        %s214 = smul.addr %s213, 8
        %s215 = scalar_lea.vmem %s1, %s214
        %s216 = sadd.s32 %s20, %s21
        %p217 = scmp.lt.s32.totalorder %s216, 0
        %s218 = scalar_select %p217, %s216, 0
        %s219 = smul.u32 2, %s218
        %p220 = scmp.eq.s32.totalorder %s21, 0
        // Predicated region
        $region29: #{tpu_custom_call.1} parent=27 // pred_check
          %p221 = pneg %p220
        $region30: #{tpu_custom_call.1} parent=27 // pred_check_branch
          %223 = sbr.rel (%p221) target = $region32
        $region31: #{tpu_custom_call.1} parent=27 // pred_region
          %vm224 = vcmask 7168
          %225 = vst.msk [vmem:[#allocation2] sm:$0xff] %vm224, 0.0
          %vm226 = vcmask 3072
          %227 = vst.msk [vmem:[#allocation2 + $0x8] sm:$0xf] %vm226, 0.0
        $region32: #{tpu_custom_call.1} parent=27 // pred_fallthru
          _
        %v228 = vld [vmem:[%s203] sm:$0xff]
        %v229 = vld [vmem:[%s203 + $0x8] sm:$0xf]
        %v230 = vld [vmem:[%s215] sm:$0xff]
        %v231 = vld [vmem:[%s215 + $0x8] sm:$0xf]
        %vm232 = vcmask 130048
        %v233 = vsel %vm232, %v228, -inf
        %234 = vmax.xlane.f32.xlu0 %v233
        %v235 = vpop.xlane.xlu0 %234
        %vm236 = vcmask 125952
        %v237 = vsel %vm236, %v229, -inf
        %238 = vmax.xlane.f32.xlu0 %v237
        %v239 = vpop.xlane.xlu0 %238
        %v240 = vsub.f32 %v228, %v235
        %v241 = vsub.f32 %v229, %v239
        %v242 = vmul.f32 %v240, 1.442695
        %v243 = vpow.pop %v242
        %v244 = vmul.f32 %v241, 1.442695
        %v245 = vpow.pop %v244
        %v246 = vsel %vm232, %v243, 0.0
        %247 = vadd.xlane.f32.xlu0 %v246
        %v248 = vpop.xlane.xlu0 %247
        %v249 = vsel %vm236, %v245, 0.0
        %250 = vadd.xlane.f32.xlu0 %v249
        %v251 = vpop.xlane.xlu0 %250
        %v252 = vlaneseq
        %v253 = vand.u32 %v252, 127
        %254 = vset.pattern.permute.xlu0 0
        %255 = vperm.xlu0 %254, %v230
        %v256 = vpop.permute.xlu0 %255
        %257 = vset.pattern.permute.xlu0 0
        %258 = vperm.xlu0 %257, %v231
        %v259 = vpop.permute.xlu0 %258
        %vm260 = vcmp.eq.s32.totalorder %v253, %v256
        %vm261 = vcmp.eq.s32.totalorder %v253, %v259
        %v262 = vsel %vm260, %v228, 0.0
        %v263 = vsel %vm261, %v229, 0.0
        %v264 = vsel %vm232, %v262, 0.0
        %265 = vadd.xlane.f32.xlu0 %v264
        %v266 = vpop.xlane.xlu0 %265
        %v267 = vsel %vm236, %v263, 0.0
        %268 = vadd.xlane.f32.xlu0 %v267
        %v269 = vpop.xlane.xlu0 %268
        %v270 = vlog2.pop %v248
        %v271 = vmul.f32 %v270, 0.6931472
        %v272 = vlog2.pop %v251
        %v273 = vmul.f32 %v272, 0.6931472
        %v274 = vadd.f32 %v235, %v271
        %v275 = vadd.f32 %v239, %v273
        %v276 = vsub.f32 %v274, %v266
        %v277 = vsub.f32 %v275, %v269
        %v278 = vmax.f32 %v276, 0.0
        %v279 = vmax.f32 %v277, 0.0
        %v280 = vsub.f32 0.0, %v278
        %v281 = vsub.f32 0.0, %v279
        %v282 = vmul.f32 %v280, 1.442695
        %v283 = vpow.pop %v282
        %v284 = vmul.f32 %v281, 1.442695
        %v285 = vpow.pop %v284
        %v286 = vsub.f32 1.0, %v283
        %v287 = vsub.f32 1.0, %v285
        %v288 = vmul.f32 %v286, %v286
        %v289 = vmul.f32 %v287, %v287
        %v290 = vmul.f32 %v288, 0.25
        %v291 = vmul.f32 %v289, 0.25
        %v292 = vmul.f32 %v290, %v278
        %v293 = vmul.f32 %v291, %v279
        %s294 = sadd.s32 %s20, %s21
        %s295 = smul.u32 %s294, 12
        %v296 = vlaneseq
        %v297 = vshrl.u32 %v296, 7
        %v298 = vadd.s32 %v297, 8
        %v299 = vstv %s295
        %v300 = vadd.s32 %v299, %v297
        %v301 = vadd.s32 %v299, %v298
        %vm302 = vcmp.lt.s32.totalorder %v300, 12
        %vm303 = vcmp.lt.s32.totalorder %v301, 12
        %v304 = vsel %vm302, %v292, 0.0
        %v305 = vsel %vm303, %v293, 0.0
        %v306 = vld [vmem:[#allocation2] sm:$0xff]
        %v307 = vld [vmem:[#allocation2 + $0x8] sm:$0xf]
        %v308 = vadd.f32 %v306, %v304
        %v309 = vadd.f32 %v307, %v305
        %vm310 = vcmask 7168
        %311 = vst.msk [vmem:[#allocation2] sm:$0xff] %vm310, %v308
        %vm312 = vcmask 3072
        %313 = vst.msk [vmem:[#allocation2 + $0x8] sm:$0xf] %vm312, %v309
        // Predicated region
        $region33: #{tpu_custom_call.1} parent=27 // pred_check
          %p314 = pneg %p220
        $region34: #{tpu_custom_call.1} parent=27 // pred_check_branch
          %316 = sbr.rel (%p314) target = $region36
        $region35: #{tpu_custom_call.1} parent=27 // pred_region
          %v317 = vld [vmem:[#allocation2] sm:$0xff]
          %v318 = vld [vmem:[#allocation2 + $0x8] sm:$0xf]
          %v319 = vsel %vm310, %v317, 0.0
          %v320 = vsel %vm312, %v318, 0.0
          %v321 = vadd.f32 %v319, %v320
          %322 = vadd.xlane.f32.xlu0 %v321
          %v323 = vpop.xlane.xlu0 %322
          %v324 = vrot.slane %v323, 4
          %v325 = vadd.f32 %v323, %v324
          %v326 = vrot.slane %v325, 2
          %v327 = vadd.f32 %v325, %v326
          %v328 = vrot.slane %v327, 1
          %v329 = vadd.f32 %v327, %v328
          %s330 = vtos %v329
          %v331 = vstv %s330
          %v332 = vadd.f32 %v331, 0.0
          %333 = vst [vmem:[%s195] sm:$0xff] %v332
        $region36: #{tpu_custom_call.1} parent=27 // pred_fallthru
          _
        %s334 = sand.u32 %s100, 1
        %s335 = scalar_lea.sflag [#allocation4], %s334
        %s336 = sand.u32 %s100, 1
        %s337 = smul.addr %s336, 8
        %s338 = scalar_lea.vmem [#allocation3], %s337
        // Predicated region
        $region37: #{tpu_custom_call.1} parent=27 // pred_check
          %p339 = pneg %p110
        $region38: #{tpu_custom_call.1} parent=27 // pred_check_branch
          %341 = sbr.rel (%p339) target = $region40
        $region39: #{tpu_custom_call.1} parent=27 // pred_region
          %343 = vsyncadd %s335, 0
          %s344 = smul.addr %s20, 8
          %s345 = scalar_lea.hbm %s2, %s344
          %s347 = sshll.u32 %s338, 4
          %s348 = int_to_ptr.vmem [resolvable:$true] %s347
          %s349 = sshll.u32 %s345, 4
          %s350 = int_to_ptr.hbm [resolvable:$true] %s349
          %352 = dma.vmem_to_hbm [thread:$0]  %s348, 128, %s350, %s335
        $region40: #{tpu_custom_call.1} parent=27 // pred_fallthru
          _
      $region28: #{tpu_custom_call.1} parent=5 // pred_fallthru
        _
      %p353 = scmp.le.s32.totalorder 2, %s11
      // Predicated region
      $region41: #{tpu_custom_call.1} parent=5 // pred_check
        %p354 = pneg %p353
      $region42: #{tpu_custom_call.1} parent=5 // pred_check_branch
        %356 = sbr.rel (%p354) target = $region44
      $region43: #{tpu_custom_call.1} parent=5 // pred_region
        %s357 = ssub.s32 %s11, 2
        // Predicated region
        $region45: #{tpu_custom_call.1} parent=43 // pred_check
          %p358 = pneg %p116
        $region46: #{tpu_custom_call.1} parent=43 // pred_check_branch
          %360 = sbr.rel (%p358) target = $region48
        $region47: #{tpu_custom_call.1} parent=43 // pred_region
          %s361 = sand.u32 %s101, 1
          %s362 = scalar_lea.sflag [#allocation4], %s361
          %s363 = sand.u32 %s101, 1
          %s364 = smul.addr %s363, 8
          %s365 = scalar_lea.vmem [#allocation3], %s364
          %367 = dma.done %s362, 128
        $region48: #{tpu_custom_call.1} parent=43 // pred_fallthru
          _
      $region44: #{tpu_custom_call.1} parent=5 // pred_fallthru
        _
    $region6: #{tpu_custom_call.1} parent=1 // loop_footer
      %s15 = sadd.s32 1, %s11
    $region7: #{tpu_custom_call.1} parent=1 // loop_footer_branch
      %10 = sbr.rel target = $region3
    $region8: #{tpu_custom_call.1} parent=1 // loop_exit
      _
    %368 = vsyncpa [#allocation4], 1
    %s369 = scalar_lea.sflag [#allocation4], 1
    %370 = vsyncpa %s369, 1

</llo_original>
